<compile_context>
chip_gen: v6e
topology: v6e:2x2x1
jax: 0.10.0
libtpu: 0.0.40
codegen_flags: <defaults>
</compile_context>

<pallas_src>
import functools

import jax
import jax.numpy as jnp
from jax import lax
from jax.experimental import pallas as pl
from jax.experimental.pallas import tpu as pltpu

_LANE = 128
_SUBLANE = 8
# Per-buffer VMEM budget for the prediction tile.  x2 (double buffering) this
# stays comfortably under the smallest default scoped-VMEM limit (16 MiB on
# v5e) and far under v7x's 64 MiB physical VMEM, so no vmem_limit bump needed.
_PRED_TILE_BUDGET_BYTES = 4 * 1024 * 1024


def _round_up(x, m):
    return (x + m - 1) // m * m


def _pick_row_tile(n, c_pad, itemsize):
    """Largest row tile (multiple of the sublane packing) within the budget."""
    # 8 rows/sublane-group for 32-bit, 16 for 16-bit, 32 for 8-bit dtypes.
    sub = _SUBLANE * max(1, 4 // max(1, itemsize))
    rows = _PRED_TILE_BUDGET_BYTES // max(1, c_pad * itemsize)
    rows = min(rows, _round_up(n, sub))
    rows = max(sub, (rows // sub) * sub)
    return rows


def _focus_metrics_kernel(pred_ref, tgt_ref, match_ref):
    """Per-row argmax over the class (lane) axis + compare against target."""
    pred = pred_ref[...]                                       # (TN, Cp)
    tgt = tgt_ref[...]                                         # (TN, 1) int32
    tn, cp = pred.shape

    # First-maximal-index argmax (matches torch.argmax(-1) tie-breaking).
    # NOTE: rows containing NaN count as incorrect here, whereas torch.argmax
    # treats NaN as the maximum -- edge case only.
    max_val = jnp.max(pred, axis=-1, keepdims=True)            # (TN, 1)
    col_idx = lax.broadcasted_iota(jnp.int32, (tn, cp), 1)     # (TN, Cp)
    cand = jnp.where(pred == max_val, col_idx, jnp.int32(cp))  # non-max -> Cp
    class_pred = jnp.min(cand, axis=-1, keepdims=True)         # (TN, 1) int32

    match_ref[...] = (class_pred == tgt).astype(jnp.int32)     # (TN, 1)


@functools.partial(jax.jit, static_argnames=("mode",))
def focus_metrics_cls(prediction, target, mode="train"):
    """JAX/Pallas equivalent of FocusMetricsCls.forward (train mode).

    prediction: (N, num_classes) float array
    target:     (N,) integer array
    returns     {'correct_pred': int32 device scalar, 'total': int32 device scalar}
    """
    # TODO(synk): 'test' mode (torch.median of class_pred over dim 0) is not
    # implemented; only the 'train' hot path is kernelized.
    if mode != "train":
        raise NotImplementedError("only 'train' mode is implemented")

    n, c = prediction.shape
    dtype = prediction.dtype
    itemsize = jnp.dtype(dtype).itemsize
    if jnp.issubdtype(dtype, jnp.inexact):
        pad_val = jnp.finfo(dtype).min
    else:
        pad_val = jnp.iinfo(dtype).min

    # Lane-dense class axis.
    c_pad = _round_up(c, _LANE)
    # Row tiling (grid axis), generation-safe VMEM budget.
    tn = _pick_row_tile(n, c_pad, itemsize)
    n_pad = _round_up(n, tn)
    num_tiles = n_pad // tn

    pred_p = prediction
    if c_pad != c or n_pad != n:
        pred_p = jnp.pad(
            prediction, ((0, n_pad - n), (0, c_pad - c)), constant_values=pad_val
        )
    # Padded targets get -1 so padded rows never count as correct.
    tgt_p = jnp.pad(
        target.astype(jnp.int32), (0, n_pad - n), constant_values=-1
    ).reshape(n_pad, 1)

    matches = pl.pallas_call(
        _focus_metrics_kernel,
        out_shape=jax.ShapeDtypeStruct((n_pad, 1), jnp.int32),
        grid=(num_tiles,),
        in_specs=[
            pl.BlockSpec((tn, c_pad), lambda i: (i, 0)),   # streaming logits
            pl.BlockSpec((tn, 1), lambda i: (i, 0)),       # targets
        ],
        out_specs=pl.BlockSpec((tn, 1), lambda i: (i, 0)),  # per-row match
        compiler_params=pltpu.CompilerParams(
            dimension_semantics=("parallel",),             # v7x: 2 TC sharding
        ),
        cost_estimate=pl.CostEstimate(
            flops=3 * n_pad * c_pad,
            transcendentals=0,
            bytes_accessed=n_pad * c_pad * itemsize + n_pad * 4 + n_pad * 4,
        ),
    )(pred_p, tgt_p)

    correct = jnp.sum(matches, dtype=jnp.int32)
    return {"correct_pred": correct, "total": jnp.int32(n)}


if __name__ == "__main__":
    key = jax.random.PRNGKey(0)
    k_pred, k_tgt, k_pred2, k_tgt2 = jax.random.split(key, 4)

    # Small shapes consistent with the module: batch of 8 logits over 32 classes.
    N, C = 8, 32
    prediction = jax.random.normal(k_pred, (N, C), dtype=jnp.float32)
    target = jax.random.randint(k_tgt, (N,), 0, C, dtype=jnp.int32)

    out = jax.block_until_ready(focus_metrics_cls(prediction, target, mode="train"))

    ref_correct = int(jnp.sum(jnp.argmax(prediction, axis=-1) == target))
    assert int(out["correct_pred"]) == ref_correct, (out, ref_correct)
    assert int(out["total"]) == N

    # Second shape exercising the lane/row padding path (N, C not aligned).
    N2, C2 = 50, 10
    prediction2 = jax.random.normal(k_pred2, (N2, C2), dtype=jnp.float32)
    target2 = jax.random.randint(k_tgt2, (N2,), 0, C2, dtype=jnp.int32)
    out2 = jax.block_until_ready(focus_metrics_cls(prediction2, target2))
    ref2 = int(jnp.sum(jnp.argmax(prediction2, axis=-1) == target2))
    assert int(out2["correct_pred"]) == ref2, (out2, ref2)
    assert int(out2["total"]) == N2

    print("KERNEL_OK")
</pallas_src>

<mosaic_0001>
module attributes {stable_mosaic.version = 11 : i64} {
  func.func @_focus_metrics_kernel(%arg0: i32, %arg1: memref<8x128xf32, #tpu.memory_space<vmem>>, %arg2: memref<8x1xi32, #tpu.memory_space<vmem>>, %arg3: memref<8x1xi32, #tpu.memory_space<vmem>>) attributes {dimension_semantics = [#tpu.dimension_semantics<parallel>], iteration_bounds = array<i64: 1>, scalar_prefetch = 0 : i64, scratch_operands = 0 : i64, tpu.core_type = #tpu.core_type<tc>, window_params = [{transform_indices = @transform_0, window_bounds = array<i64: 8, 128>}, {transform_indices = @transform_1, window_bounds = array<i64: 8, 1>}, {transform_indices = @transform_2, window_bounds = array<i64: 8, 1>}]} {
    %c0 = arith.constant 0 : index
    %c0_0 = arith.constant 0 : index
    %0 = vector.load %arg1[%c0, %c0_0] : memref<8x128xf32, #tpu.memory_space<vmem>>, vector<8x128xf32>
    %c0_1 = arith.constant 0 : index
    %c0_2 = arith.constant 0 : index
    %1 = vector.load %arg2[%c0_1, %c0_2] : memref<8x1xi32, #tpu.memory_space<vmem>>, vector<8x1xi32>
    %cst = arith.constant dense<0xFF800000> : vector<8xf32>
    %2 = vector.multi_reduction <maximumf>, %0, %cst [1] : vector<8x128xf32> to vector<8xf32>
    %3 = vector.shape_cast %2 : vector<8xf32> to vector<8x1xf32>
    %4 = tpu.iota {dimensions = array<i32: 1>} : vector<8x128xi32>
    %5 = vector.broadcast %3 : vector<8x1xf32> to vector<8x128xf32>
    %6 = arith.cmpf oeq, %0, %5 : vector<8x128xf32>
    %c128_i32 = arith.constant 128 : i32
    %7 = vector.broadcast %c128_i32 : i32 to vector<8x128xi32>
    %8 = arith.select %6, %4, %7 : vector<8x128xi1>, vector<8x128xi32>
    %cst_3 = arith.constant dense<2147483647> : vector<8xi32>
    %9 = vector.multi_reduction <minsi>, %8, %cst_3 [1] : vector<8x128xi32> to vector<8xi32>
    %10 = vector.shape_cast %9 : vector<8xi32> to vector<8x1xi32>
    %11 = arith.cmpi eq, %10, %1 : vector<8x1xi32>
    %12 = arith.extui %11 : vector<8x1xi1> to vector<8x1xi32>
    %c0_4 = arith.constant 0 : index
    %c0_5 = arith.constant 0 : index
    %13 = vector.load %arg3[%c0_4, %c0_5] : memref<8x1xi32, #tpu.memory_space<vmem>>, vector<8x1xi32>
    tpu.vector_store %arg3[%c0_4, %c0_5], %12 {strides = array<i32>} : memref<8x1xi32, #tpu.memory_space<vmem>>, vector<8x1xi32>,
    return
  }
  func.func @transform_0(%arg0: i32) -> (i32, i32) {
    %c0_i32 = arith.constant 0 : i32
    %c0_i32_0 = arith.constant 0 : i32
    return %arg0, %c0_i32 : i32, i32
  }
  func.func @transform_1(%arg0: i32) -> (i32, i32) {
    %c0_i32 = arith.constant 0 : i32
    %c0_i32_0 = arith.constant 0 : i32
    return %arg0, %c0_i32 : i32, i32
  }
  func.func @transform_2(%arg0: i32) -> (i32, i32) {
    %c0_i32 = arith.constant 0 : i32
    %c0_i32_0 = arith.constant 0 : i32
    return %arg0, %c0_i32 : i32, i32
  }
}

</mosaic_0001>

<llo_original>
// kernel: focus_metrics_cls.1
$region0: #{focus_metrics_cls.1}
  #allocation0 [shape = 'u32[]', space=smem, size = 0x4, offset = 0x4, fixed_abs, tag = 'smem constant byte address 0x4 - core index']
  #allocation1 [shape = 'u32[144,128]{1,0:T(1,128)}', space=vmem, size = 0x12000, scoped, tag = 'internal scratch']
  %s0 = inlined_call_operand.vmem [shape: f32[8,128], index: 0, kind: input, shape index: {}]
  %s1 = inlined_call_operand.vmem [shape: s32[8,1], index: 1, kind: input, shape index: {}]
  %s2 = inlined_call_operand.vmem [shape: s32[8,1], index: 2, kind: output, shape index: {}]
  %s3 = sld [smem:[#allocation0]]
  $region18: #{focus_metrics_cls.1} parent=0
    _
  %s5 = ssub.s32 1, %s3
  %s6 = scalar_select 0, %s5, %s3
  // Predicated region
  $region2: #{focus_metrics_cls.1} parent=0 // pred_check
    _
  $region3: #{focus_metrics_cls.1} parent=0 // pred_check_branch
    %8 = sbr.rel (0) target = $region5
  $region4: #{focus_metrics_cls.1} parent=0 // pred_region
    _
  $region5: #{focus_metrics_cls.1} parent=0 // pred_fallthru
    _
  // Predicated region
  $region6: #{focus_metrics_cls.1} parent=0 // pred_check
    _
  $region7: #{focus_metrics_cls.1} parent=0 // pred_check_branch
    %10 = sbr.rel (0) target = $region9
  $region8: #{focus_metrics_cls.1} parent=0 // pred_region
    _
  $region9: #{focus_metrics_cls.1} parent=0 // pred_fallthru
    _
  %v11 = vld [vmem:[%s0] sm:$0xff]
  %v12 = vld [vmem:[%s1] sm:$0xff]
  %13 = vmax.xlane.f32.xlu0 %v11
  %v14 = vpop.xlane.xlu0 %13
  %v15 = vlaneseq
  %v16 = vand.u32 %v15, 127
  %vm17 = vcmp.eq.f32.partialorder %v11, %v14
  %v18 = vsel %vm17, %v16, 128
  %v19 = vand.u32 %v18, 65535
  %v20 = vshra.s32 %v18, 16
  %v21 = vcvt.s32.f32 %v19
  %v22 = vcvt.s32.f32 %v20
  %23 = vmin.xlane.f32.xlu0 %v22
  %v24 = vpop.xlane.xlu0 %23
  %vm25 = vcmp.eq.f32.partialorder %v22, %v24
  %v26 = vsel %vm25, %v21, inf
  %27 = vmin.xlane.f32.xlu0 %v26
  %v28 = vpop.xlane.xlu0 %27
  %v29 = vcvt.f32.s32 %v28
  %v30 = vcvt.f32.s32 %v24
  %v31 = vshll.u32 %v30, 16
  %v32 = vadd.s32 %v31, %v29
  %vm33 = vcmp.eq.s32.totalorder %v32, %v12
  %v34 = vsel %vm33, 1, 0
  %vm35 = vcmask 7168
  %36 = vst.msk [vmem:[%s2] sm:$0xff] %vm35, %v34
  // Predicated region
  $region10: #{focus_metrics_cls.1} parent=0 // pred_check
    _
  $region11: #{focus_metrics_cls.1} parent=0 // pred_check_branch
    %38 = sbr.rel (0) target = $region13
  $region12: #{focus_metrics_cls.1} parent=0 // pred_region
    _
  $region13: #{focus_metrics_cls.1} parent=0 // pred_fallthru
    _
  // Predicated region
  $region14: #{focus_metrics_cls.1} parent=0 // pred_check
    _
  $region15: #{focus_metrics_cls.1} parent=0 // pred_check_branch
    %40 = sbr.rel (0) target = $region17
  $region16: #{focus_metrics_cls.1} parent=0 // pred_region
    _
  $region17: #{focus_metrics_cls.1} parent=0 // pred_fallthru
    _

</llo_original>
